<compile_context>
chip_gen: v5e
topology: v5e:2x2
jax: 0.10.0
libtpu: 0.0.40
codegen_flags: <defaults>
</compile_context>

<pallas_src>
import math
from functools import partial

import jax
import jax.numpy as jnp
from jax.experimental import pallas as pl
from jax.experimental.pallas import tpu as pltpu

_INV_SQRT2 = 0.7071067811865476     # 1/sqrt(2) for exact-erf GELU
_SQRT_2_OVER_PI = 0.7978845608028654  # sqrt(2/pi) for tanh-approx GELU


def _round_up(x, m):
    return ((x + m - 1) // m) * m


def _pick_divisor_tile(total, requested, quantum=128):
    """Largest multiple of `quantum` that divides `total` and is <= requested."""
    requested = max(quantum, min(requested, total))
    best = quantum
    t = quantum
    while t <= requested:
        if total % t == 0:
            best = t
        t += quantum
    return best


def _device_defaults():
    """Generation-dependent tile defaults and VMEM limit."""
    kind = ""
    try:
        kind = jax.devices()[0].device_kind.lower()
    except Exception:
        pass
    if "v5 lite" in kind or "v5e" in kind or "v5lite" in kind:
        # v5e: roofline crossover ~240 FLOP/byte -> 512 rows already MXU-bound;
        # 128 MiB VMEM lets the weights sit resident for typical diffuser dims.
        return 512, 2048, 96 * 1024 * 1024
    if "v6" in kind:
        # v6e: ~650 FLOP/byte crossover -> big row tiles; 128 MiB VMEM.
        return 1024, 2048, 96 * 1024 * 1024
    # v7x (64 MiB VMEM per TC) or unknown: stay conservative on VMEM.
    return 1024, 512, 48 * 1024 * 1024


def _vmem_estimate(row_tile, inner_tile, dim, dim_out, in_bytes, out_bytes):
    """Rough double-buffered VMEM footprint of one grid step."""
    dbl = 2
    b = dbl * row_tile * dim * in_bytes              # x tile
    b += dbl * 2 * dim * inner_tile * in_bytes       # stacked W1 tile
    b += dbl * 2 * inner_tile * in_bytes             # stacked b1 tile
    b += dbl * inner_tile * dim_out * in_bytes       # W2 tile
    b += dbl * dim_out * in_bytes                    # b2
    b += dbl * row_tile * dim_out * out_bytes        # output tile
    b += row_tile * dim_out * 4                      # f32 accumulator scratch
    return b


def _ff_geglu_kernel(x_ref, w1_ref, b1_ref, w2_ref, b2_ref, o_ref, acc_ref, *,
                     gelu_tanh):
    # Grid: (row_tiles, inner_tiles); inner axis (j) is the reduction axis.
    #   x_ref  : (row_tile, dim)
    #   w1_ref : (2, dim, inner_tile)     [0]=h half, [1]=g half
    #   b1_ref : (2, 1, inner_tile)
    #   w2_ref : (inner_tile, dim_out)    b2_ref : (1, dim_out)
    #   o_ref  : (row_tile, dim_out)      acc_ref: (row_tile, dim_out) f32
    j = pl.program_id(1)

    @pl.when(j == 0)
    def _():
        acc_ref[...] = jnp.zeros_like(acc_ref)

    x = x_ref[...]  # native dtype (bf16 -> full-rate MXU)

    h = jnp.dot(x, w1_ref[0], preferred_element_type=jnp.float32)
    h = h + b1_ref[0].astype(jnp.float32)
    g = jnp.dot(x, w1_ref[1], preferred_element_type=jnp.float32)
    g = g + b1_ref[1].astype(jnp.float32)

    if gelu_tanh:
        # tanh-approx GELU: transcendental runs on the EUP slot (cheap on v6e/v7x).
        inner = _SQRT_2_OVER_PI * (g + 0.044715 * g * g * g)
        gelu_g = 0.5 * g * (1.0 + jnp.tanh(inner))
    else:
        # exact (erf) GELU, matching torch F.gelu(approximate="none")
        gelu_g = 0.5 * g * (1.0 + jax.lax.erf(g * _INV_SQRT2))

    z = (h * gelu_g).astype(w2_ref.dtype)  # back to operand dtype for 2nd MXU pass
    acc_ref[...] += jnp.dot(z, w2_ref[...], preferred_element_type=jnp.float32)

    @pl.when(j == pl.num_programs(1) - 1)
    def _():
        out = acc_ref[...] + b2_ref[...].astype(jnp.float32)
        o_ref[...] = out.astype(o_ref.dtype)


@partial(jax.jit, static_argnames=("row_tile", "inner_tile", "cast_to_bf16",
                                   "gelu_tanh", "vmem_limit"))
def _ff_geglu_impl(x, w1, b1, w2, b2, *, row_tile, inner_tile, cast_to_bf16,
                   gelu_tanh, vmem_limit):
    B, S, dim = x.shape
    two_inner = w1.shape[0]
    inner = two_inner // 2
    dim_out = w2.shape[0]

    rows = B * S
    rows_p = _round_up(rows, row_tile)
    inner_p = _round_up(inner, 128)

    compute_dtype = jnp.bfloat16 if cast_to_bf16 else x.dtype
    out_dtype = x.dtype

    # ---- wrapper-side layout prep (inside the jitted program) ----
    x2 = x.reshape(rows, dim).astype(compute_dtype)
    if rows_p != rows:
        x2 = jnp.pad(x2, ((0, rows_p - rows), (0, 0)))

    w1h_t = jnp.transpose(w1[:inner, :]).astype(compute_dtype)  # (dim, inner)
    w1g_t = jnp.transpose(w1[inner:, :]).astype(compute_dtype)  # (dim, inner)
    b1h = b1[:inner].reshape(1, inner).astype(compute_dtype)
    b1g = b1[inner:].reshape(1, inner).astype(compute_dtype)
    w2_t = jnp.transpose(w2).astype(compute_dtype)               # (inner, dim_out)
    if inner_p != inner:
        pad_c = ((0, 0), (0, inner_p - inner))
        w1h_t = jnp.pad(w1h_t, pad_c)
        w1g_t = jnp.pad(w1g_t, pad_c)
        b1h = jnp.pad(b1h, pad_c)     # zero bias pad -> gelu(0)=0 invariant
        b1g = jnp.pad(b1g, pad_c)
        w2_t = jnp.pad(w2_t, ((0, inner_p - inner), (0, 0)))

    # Stack h/g halves -> one big contiguous DMA stream per operand.
    w1s = jnp.stack([w1h_t, w1g_t], axis=0)       # (2, dim, inner_p)
    b1s = jnp.stack([b1h, b1g], axis=0)           # (2, 1, inner_p)
    b2_2 = b2.reshape(1, dim_out).astype(compute_dtype)

    grid = (rows_p // row_tile, inner_p // inner_tile)

    in_bytes = jnp.dtype(compute_dtype).itemsize
    out_bytes = jnp.dtype(out_dtype).itemsize
    flops = 2 * rows_p * dim * (2 * inner_p) + 2 * rows_p * inner_p * dim_out
    bytes_accessed = (rows_p * dim * in_bytes
                      + 2 * dim * inner_p * in_bytes
                      + 2 * inner_p * in_bytes
                      + inner_p * dim_out * in_bytes
                      + dim_out * in_bytes
                      + rows_p * dim_out * out_bytes)

    kernel = partial(_ff_geglu_kernel, gelu_tanh=gelu_tanh)

    out = pl.pallas_call(
        kernel,
        out_shape=jax.ShapeDtypeStruct((rows_p, dim_out), out_dtype),
        grid_spec=pltpu.PrefetchScalarGridSpec(
            num_scalar_prefetch=0,
            grid=grid,
            in_specs=[
                pl.BlockSpec((row_tile, dim), lambda i, j: (i, 0)),          # x rows
                pl.BlockSpec((2, dim, inner_tile), lambda i, j: (0, 0, j)),  # W1 h/g tile
                pl.BlockSpec((2, 1, inner_tile), lambda i, j: (0, 0, j)),    # b1 h/g tile
                pl.BlockSpec((inner_tile, dim_out), lambda i, j: (j, 0)),    # W2 K-tile
                pl.BlockSpec((1, dim_out), lambda i, j: (0, 0)),             # b2
            ],
            out_specs=pl.BlockSpec((row_tile, dim_out), lambda i, j: (i, 0)),
            scratch_shapes=[pltpu.VMEM((row_tile, dim_out), jnp.float32)],
        ),
        compiler_params=pltpu.CompilerParams(
            dimension_semantics=("parallel", "arbitrary"),
            vmem_limit_bytes=vmem_limit,
        ),
        cost_estimate=pl.CostEstimate(
            flops=flops,
            transcendentals=rows_p * inner_p,
            bytes_accessed=bytes_accessed,
        ),
    )(x2, w1s, b1s, w2_t, b2_2)

    return out[:rows].reshape(B, S, dim_out)


def feed_forward_geglu(x, w1, b1, w2, b2, *, row_tile=None, inner_tile=None,
                       cast_to_bf16=False, gelu_approximate="none"):
    """Fused GEGLU feed-forward.

    x : (batch, seq, dim).  Torch layouts: w1 (2*inner, dim), b1 (2*inner,),
    w2 (dim_out, inner), b2 (dim_out,).

    cast_to_bf16     : opt-in bf16 operand cast (f32 accumulation kept).
    gelu_approximate : "none" (exact erf, matches torch F.gelu) or "tanh"
                       (EUP-friendly approximation; slight numerics deviation).
    """
    B, S, dim = x.shape
    inner = w1.shape[0] // 2
    dim_out = w2.shape[0]
    rows = B * S

    def_row, def_inner, vmem_limit = _device_defaults()
    if row_tile is None:
        row_tile = def_row
    if inner_tile is None:
        inner_tile = def_inner

    # Row tile: multiple of 8, clamped to the (8-rounded) row count.
    row_tile = max(8, _round_up(row_tile, 8))
    row_tile = min(row_tile, _round_up(rows, 8))

    # Inner tile: a divisor of the 128-padded inner dim (no wasted zero tiles).
    inner_p = _round_up(inner, 128)
    inner_tile = _pick_divisor_tile(inner_p, inner_tile)

    # Shrink tiles until the double-buffered working set fits the VMEM budget.
    in_bytes = 2 if cast_to_bf16 else jnp.dtype(x.dtype).itemsize
    out_bytes = jnp.dtype(x.dtype).itemsize
    budget = int(0.7 * vmem_limit)
    while _vmem_estimate(row_tile, inner_tile, dim, dim_out,
                         in_bytes, out_bytes) > budget:
        if inner_tile > 256:
            inner_tile = _pick_divisor_tile(inner_p, inner_tile // 2)
        elif row_tile > 64:
            row_tile = max(64, _round_up(row_tile // 2, 8))
        else:
            break

    # Keep at least 2 row tiles when possible (feeds both v7x TensorCores).
    if _round_up(rows, row_tile) // row_tile < 2 and row_tile > 8:
        half = _round_up((row_tile + 1) // 2, 8)
        if _round_up(rows, half) // half >= 2:
            row_tile = half

    return _ff_geglu_impl(
        x, w1, b1, w2, b2,
        row_tile=int(row_tile), inner_tile=int(inner_tile),
        cast_to_bf16=bool(cast_to_bf16),
        gelu_tanh=(gelu_approximate == "tanh"),
        vmem_limit=int(vmem_limit),
    )


def _reference(x, w1, b1, w2, b2, approximate="none"):
    x = x.astype(jnp.float32)
    w1 = w1.astype(jnp.float32)
    b1 = b1.astype(jnp.float32)
    w2 = w2.astype(jnp.float32)
    b2 = b2.astype(jnp.float32)
    y = jnp.einsum("bsd,od->bso", x, w1) + b1
    h, g = jnp.split(y, 2, axis=-1)
    if approximate == "tanh":
        gelu_g = 0.5 * g * (1.0 + jnp.tanh(_SQRT_2_OVER_PI * (g + 0.044715 * g ** 3)))
    else:
        gelu_g = 0.5 * g * (1.0 + jax.lax.erf(g * _INV_SQRT2))
    z = h * gelu_g
    return jnp.einsum("bsi,oi->bso", z, w2) + b2


if __name__ == "__main__":
    # Shapes consistent with FeedForward(dim=32, mult=4, activation_fn="geglu"):
    #   inner_dim = 128, proj1: Linear(32, 256), proj2: Linear(128, 32)
    batch, seq, dim, mult = 2, 8, 32, 4
    inner = dim * mult
    dim_out = dim

    key = jax.random.PRNGKey(0)
    k_x, k_w1, k_b1, k_w2, k_b2, k_x2 = jax.random.split(key, 6)

    x = jax.random.normal(k_x, (batch, seq, dim), dtype=jnp.float32)

    # Deterministic synthetic parameters (torch Linear layout: weight (out,in), bias (out,))
    bound1 = 1.0 / math.sqrt(dim)
    w1 = jax.random.uniform(k_w1, (2 * inner, dim), jnp.float32, -bound1, bound1)
    b1 = jax.random.uniform(k_b1, (2 * inner,), jnp.float32, -bound1, bound1)
    bound2 = 1.0 / math.sqrt(inner)
    w2 = jax.random.uniform(k_w2, (dim_out, inner), jnp.float32, -bound2, bound2)
    b2 = jax.random.uniform(k_b2, (dim_out,), jnp.float32, -bound2, bound2)

    # --- f32 path, exact GELU (matches torch F.gelu default) ---
    out = jax.block_until_ready(feed_forward_geglu(x, w1, b1, w2, b2))
    ref = _reference(x, w1, b1, w2, b2)
    assert out.shape == (batch, seq, dim_out)
    assert jnp.allclose(out, ref, atol=1e-4, rtol=1e-4), "f32 mismatch vs reference"

    # --- ragged rows (batch*seq not a multiple of the row tile) -> padding path ---
    x_rag = jax.random.normal(k_x2, (3, 5, dim), dtype=jnp.float32)
    out_rag = jax.block_until_ready(feed_forward_geglu(x_rag, w1, b1, w2, b2))
    ref_rag = _reference(x_rag, w1, b1, w2, b2)
    assert out_rag.shape == (3, 5, dim_out)
    assert jnp.allclose(out_rag, ref_rag, atol=1e-4, rtol=1e-4), "ragged mismatch"

    # --- bf16 operands (fast MXU path), f32 accumulation inside the kernel ---
    xb = x.astype(jnp.bfloat16)
    w1b, b1b = w1.astype(jnp.bfloat16), b1.astype(jnp.bfloat16)
    w2b, b2b = w2.astype(jnp.bfloat16), b2.astype(jnp.bfloat16)
    out_bf = jax.block_until_ready(feed_forward_geglu(xb, w1b, b1b, w2b, b2b))
    ref_bf = _reference(xb, w1b, b1b, w2b, b2b)
    assert out_bf.shape == (batch, seq, dim_out)
    assert jnp.allclose(out_bf.astype(jnp.float32), ref_bf, atol=7.5e-2, rtol=5e-2), \
        "bf16 mismatch vs reference"

    # --- opt-in bf16 operand cast from f32 inputs ---
    out_cast = jax.block_until_ready(
        feed_forward_geglu(x, w1, b1, w2, b2, cast_to_bf16=True))
    assert jnp.allclose(out_cast, ref_bf.astype(jnp.float32), atol=7.5e-2, rtol=5e-2), \
        "bf16-cast mismatch vs reference"

    # --- opt-in tanh-approx GELU (EUP path), checked against matching reference ---
    out_tanh = jax.block_until_ready(
        feed_forward_geglu(x, w1, b1, w2, b2, gelu_approximate="tanh"))
    ref_tanh = _reference(x, w1, b1, w2, b2, approximate="tanh")
    assert jnp.allclose(out_tanh, ref_tanh, atol=1e-4, rtol=1e-4), "tanh-gelu mismatch"

    print("KERNEL_OK")
</pallas_src>

<mosaic_0001>
module attributes {stable_mosaic.version = 11 : i64} {
  func.func @_ff_geglu_kernel(%arg0: i32, %arg1: i32, %arg2: memref<8x32xf32, #tpu.memory_space<vmem>>, %arg3: memref<2x32x128xf32, #tpu.memory_space<vmem>>, %arg4: memref<2x1x128xf32, #tpu.memory_space<vmem>>, %arg5: memref<128x32xf32, #tpu.memory_space<vmem>>, %arg6: memref<1x32xf32, #tpu.memory_space<vmem>>, %arg7: memref<8x32xf32, #tpu.memory_space<vmem>>, %arg8: memref<8x32xf32, #tpu.memory_space<vmem>>) attributes {dimension_semantics = [#tpu.dimension_semantics<parallel>, #tpu.dimension_semantics<arbitrary>], iteration_bounds = array<i64: 2, 1>, scalar_prefetch = 0 : i64, scratch_operands = 1 : i64, tpu.core_type = #tpu.core_type<tc>, window_params = [{transform_indices = @transform_0, window_bounds = array<i64: 8, 32>}, {transform_indices = @transform_1, window_bounds = array<i64: 2, 32, 128>}, {transform_indices = @transform_2, window_bounds = array<i64: 2, 1, 128>}, {transform_indices = @transform_3, window_bounds = array<i64: 128, 32>}, {pipeline_mode = #tpu.pipeline_mode<synchronous>, transform_indices = @transform_4, window_bounds = array<i64: 1, 32>}, {transform_indices = @transform_5, window_bounds = array<i64: 8, 32>}]} {
    %c0_i32 = arith.constant 0 : i32
    %0 = arith.cmpi eq, %arg1, %c0_i32 : i32
    %1 = arith.extui %0 : i1 to i32
    %c0_i32_0 = arith.constant 0 : i32
    %2 = arith.cmpi ne, %1, %c0_i32_0 : i32
    scf.if %2 {
      %cst_26 = arith.constant 0.000000e+00 : f32
      %35 = vector.broadcast %cst_26 : f32 to vector<8x32xf32>
      %c0_27 = arith.constant 0 : index
      %c0_28 = arith.constant 0 : index
      %36 = vector.load %arg8[%c0_27, %c0_28] : memref<8x32xf32, #tpu.memory_space<vmem>>, vector<8x32xf32>
      tpu.vector_store %arg8[%c0_27, %c0_28], %35 {strides = array<i32>} : memref<8x32xf32, #tpu.memory_space<vmem>>, vector<8x32xf32>,
    } else {
    }
    %c0 = arith.constant 0 : index
    %c0_1 = arith.constant 0 : index
    %3 = vector.load %arg2[%c0, %c0_1] : memref<8x32xf32, #tpu.memory_space<vmem>>, vector<8x32xf32>
    %c0_2 = arith.constant 0 : index
    %c0_3 = arith.constant 0 : index
    %c0_4 = arith.constant 0 : index
    %4 = vector.load %arg3[%c0_2, %c0_3, %c0_4] : memref<2x32x128xf32, #tpu.memory_space<vmem>>, vector<1x32x128xf32>
    %5 = vector.shape_cast %4 : vector<1x32x128xf32> to vector<32x128xf32>
    %cst = arith.constant dense<0.000000e+00> : vector<8x128xf32>
    %6 = tpu.matmul %3, %5, %cst {dimension_numbers = #tpu.dot_dimension_numbers<[1], [0], [0], [1], [0, 0, 1, 1], [], []>} : vector<8x32xf32>, vector<32x128xf32>, vector<8x128xf32> -> vector<8x128xf32>
    %c0_5 = arith.constant 0 : index
    %c0_6 = arith.constant 0 : index
    %c0_7 = arith.constant 0 : index
    %7 = vector.load %arg4[%c0_5, %c0_6, %c0_7] : memref<2x1x128xf32, #tpu.memory_space<vmem>>, vector<1x1x128xf32>
    %8 = vector.shape_cast %7 : vector<1x1x128xf32> to vector<1x128xf32>
    %9 = vector.broadcast %8 : vector<1x128xf32> to vector<8x128xf32>
    %10 = arith.addf %6, %9 : vector<8x128xf32>
    %c1 = arith.constant 1 : index
    %c0_8 = arith.constant 0 : index
    %c0_9 = arith.constant 0 : index
    %11 = vector.load %arg3[%c1, %c0_8, %c0_9] : memref<2x32x128xf32, #tpu.memory_space<vmem>>, vector<1x32x128xf32>
    %12 = vector.shape_cast %11 : vector<1x32x128xf32> to vector<32x128xf32>
    %cst_10 = arith.constant dense<0.000000e+00> : vector<8x128xf32>
    %13 = tpu.matmul %3, %12, %cst_10 {dimension_numbers = #tpu.dot_dimension_numbers<[1], [0], [0], [1], [0, 0, 1, 1], [], []>} : vector<8x32xf32>, vector<32x128xf32>, vector<8x128xf32> -> vector<8x128xf32>
    %c1_11 = arith.constant 1 : index
    %c0_12 = arith.constant 0 : index
    %c0_13 = arith.constant 0 : index
    %14 = vector.load %arg4[%c1_11, %c0_12, %c0_13] : memref<2x1x128xf32, #tpu.memory_space<vmem>>, vector<1x1x128xf32>
    %15 = vector.shape_cast %14 : vector<1x1x128xf32> to vector<1x128xf32>
    %16 = vector.broadcast %15 : vector<1x128xf32> to vector<8x128xf32>
    %17 = arith.addf %13, %16 : vector<8x128xf32>
    %cst_14 = arith.constant 5.000000e-01 : f32
    %18 = vector.broadcast %cst_14 : f32 to vector<8x128xf32>
    %19 = arith.mulf %18, %17 : vector<8x128xf32>
    %cst_15 = arith.constant 0.707106769 : f32
    %20 = vector.broadcast %cst_15 : f32 to vector<8x128xf32>
    %21 = arith.mulf %17, %20 : vector<8x128xf32>
    %22 = math.erf %21 : vector<8x128xf32>
    %cst_16 = arith.constant 1.000000e+00 : f32
    %23 = vector.broadcast %cst_16 : f32 to vector<8x128xf32>
    %24 = arith.addf %23, %22 : vector<8x128xf32>
    %25 = arith.mulf %19, %24 : vector<8x128xf32>
    %26 = arith.mulf %10, %25 : vector<8x128xf32>
    %c0_17 = arith.constant 0 : index
    %c0_18 = arith.constant 0 : index
    %27 = vector.load %arg8[%c0_17, %c0_18] : memref<8x32xf32, #tpu.memory_space<vmem>>, vector<8x32xf32>
    %c0_19 = arith.constant 0 : index
    %c0_20 = arith.constant 0 : index
    %28 = vector.load %arg5[%c0_19, %c0_20] : memref<128x32xf32, #tpu.memory_space<vmem>>, vector<128x32xf32>
    %cst_21 = arith.constant dense<0.000000e+00> : vector<8x32xf32>
    %29 = tpu.matmul %26, %28, %cst_21 {dimension_numbers = #tpu.dot_dimension_numbers<[1], [0], [0], [1], [0, 0, 1, 1], [], []>} : vector<8x128xf32>, vector<128x32xf32>, vector<8x32xf32> -> vector<8x32xf32>
    %30 = arith.addf %27, %29 : vector<8x32xf32>
    %c0_22 = arith.constant 0 : index
    %c0_23 = arith.constant 0 : index
    %31 = vector.load %arg8[%c0_22, %c0_23] : memref<8x32xf32, #tpu.memory_space<vmem>>, vector<8x32xf32>
    tpu.vector_store %arg8[%c0_22, %c0_23], %30 {strides = array<i32>} : memref<8x32xf32, #tpu.memory_space<vmem>>, vector<8x32xf32>,
    %c0_i32_24 = arith.constant 0 : i32
    %32 = arith.cmpi eq, %arg1, %c0_i32_24 : i32
    %33 = arith.extui %32 : i1 to i32
    %c0_i32_25 = arith.constant 0 : i32
    %34 = arith.cmpi ne, %33, %c0_i32_25 : i32
    scf.if %34 {
      %c0_26 = arith.constant 0 : index
      %c0_27 = arith.constant 0 : index
      %35 = vector.load %arg8[%c0_26, %c0_27] : memref<8x32xf32, #tpu.memory_space<vmem>>, vector<8x32xf32>
      %c0_28 = arith.constant 0 : index
      %c0_29 = arith.constant 0 : index
      %36 = vector.load %arg6[%c0_28, %c0_29] : memref<1x32xf32, #tpu.memory_space<vmem>>, vector<1x32xf32>
      %37 = vector.broadcast %36 : vector<1x32xf32> to vector<8x32xf32>
      %38 = arith.addf %35, %37 : vector<8x32xf32>
      %c0_30 = arith.constant 0 : index
      %c0_31 = arith.constant 0 : index
      %39 = vector.load %arg7[%c0_30, %c0_31] : memref<8x32xf32, #tpu.memory_space<vmem>>, vector<8x32xf32>
      tpu.vector_store %arg7[%c0_30, %c0_31], %38 {strides = array<i32>} : memref<8x32xf32, #tpu.memory_space<vmem>>, vector<8x32xf32>,
    } else {
    }
    return
  }
  func.func @transform_0(%arg0: i32, %arg1: i32) -> (i32, i32) {
    %c0_i32 = arith.constant 0 : i32
    %c0_i32_0 = arith.constant 0 : i32
    return %arg0, %c0_i32 : i32, i32
  }
  func.func @transform_1(%arg0: i32, %arg1: i32) -> (i32, i32, i32) {
    %c0_i32 = arith.constant 0 : i32
    %c0_i32_0 = arith.constant 0 : i32
    %c0_i32_1 = arith.constant 0 : i32
    return %c0_i32, %c0_i32_0, %arg1 : i32, i32, i32
  }
  func.func @transform_2(%arg0: i32, %arg1: i32) -> (i32, i32, i32) {
    %c0_i32 = arith.constant 0 : i32
    %c0_i32_0 = arith.constant 0 : i32
    %c0_i32_1 = arith.constant 0 : i32
    return %c0_i32, %c0_i32_0, %arg1 : i32, i32, i32
  }
  func.func @transform_3(%arg0: i32, %arg1: i32) -> (i32, i32) {
    %c0_i32 = arith.constant 0 : i32
    %c0_i32_0 = arith.constant 0 : i32
    return %arg1, %c0_i32 : i32, i32
  }
  func.func @transform_4(%arg0: i32, %arg1: i32) -> (i32, i32) {
    %c0_i32 = arith.constant 0 : i32
    %c0_i32_0 = arith.constant 0 : i32
    %c0_i32_1 = arith.constant 0 : i32
    return %c0_i32, %c0_i32_0 : i32, i32
  }
  func.func @transform_5(%arg0: i32, %arg1: i32) -> (i32, i32) {
    %c0_i32 = arith.constant 0 : i32
    %c0_i32_0 = arith.constant 0 : i32
    return %arg0, %c0_i32 : i32, i32
  }
}

</mosaic_0001>

<llo_original>
// kernel: _ff_geglu_impl.1
$region0: #{_ff_geglu_impl.1}
  #allocation0 [shape = 'u32[]', space=smem, size = 0x4, offset = 0x4, fixed_abs, tag = 'smem constant byte address 0x4 - core index']
  #allocation1 [shape = 'u32[72,128]{1,0:T(1,128)}', space=vmem, size = 0x9000, scoped, tag = 'internal scratch']
  #allocation2 [shape = 'f32[8,32]{1,0:T(8,128)}', space=vmem, size = 0x1000, scoped, tag = 'scratch operand']
  %s0 = inlined_call_operand.vmem [shape: f32[16,32], index: 0, kind: input, shape index: {}]
  %s1 = inlined_call_operand.vmem [shape: f32[2,32,128], index: 1, kind: input, shape index: {}]
  %s2 = inlined_call_operand.vmem [shape: f32[2,1,128], index: 2, kind: input, shape index: {}]
  %s3 = inlined_call_operand.vmem [shape: f32[128,32], index: 3, kind: input, shape index: {}]
  %s4 = inlined_call_operand.vmem [shape: f32[1,32], index: 4, kind: input, shape index: {}]
  %s5 = inlined_call_operand.hbm [shape: f32[16,32], index: 5, kind: output, shape index: {}]
  %s6 = sld [smem:[#allocation0]]
  $region61: #{_ff_geglu_impl.1} parent=0
    _
  %s8 = ssub.s32 1, %s6
  %s9 = scalar_select 0, %s8, %s6
  $region1: #{_ff_geglu_impl.1} parent=0
    #allocation3 [shape = 'u8[8192]{0}', space=vmem, size = 0x2000, scoped, tag = 'output window, operand 0']
    #allocation4 [shape = 's32[2]{0}', space=sflag, size = 0x8, scoped, tag = 'scoped memory for _ff_geglu_impl.1']
    %10 = vsyncpa [#allocation4], 0
    %s11 = scalar_lea.sflag [#allocation4], 1
    %12 = vsyncpa %s11, 0
    loop: start=0, step=1, limit=4
    $region2: #{_ff_geglu_impl.1} parent=1 // loop_pre_header
      _
    $region3: #{_ff_geglu_impl.1} parent=1 // loop_header
      %s14 = sphi 0, %s18
      %p15 = scmp.ge.s32.totalorder %s14, 4
      %s21 = sphi 0, %s33
      %s22 = sphi 0, %s29
      %s23 = sphi 0, %s21
      %s24 = sphi 0, %s22
      %s25 = sphi 0, %s23
      %s26 = sphi 0, %s24
      %s36 = sphi 0, %s38
      %s39 = sphi 0, %s36
      %s40 = sphi 0, %s39
      %s56 = sphi 0, %s40
      %s62 = sphi 0, %s64
      %s65 = sphi 0, %s62
      %s66 = sphi 0, %s65
      %s82 = sphi 0, %s66
      %s88 = sphi 0, %s90
      %s91 = sphi 0, %s88
      %s92 = sphi 0, %s91
      %s108 = sphi 0, %s92
      %s114 = sphi 0, %s116
      %s117 = sphi 0, %s114
      %s118 = sphi 0, %s117
      %s134 = sphi 0, %s118
      %s138 = sphi 0, %s138
      %s140 = sphi 0, %s138
      %s141 = sphi 0, %s140
      %s155 = sphi 0, %s141
      %s161 = sphi 0, %s163
      %s164 = sphi 0, %s161
      %s165 = sphi 0, %s164
      %s181 = sphi 0, %s165
    $region4: #{_ff_geglu_impl.1} parent=1 // loop_header_branch
      %17 = sbr.rel (%p15) target = $region8
    $region5: #{_ff_geglu_impl.1} parent=1 // loop_body
      %s19 = ssub.s32 %s14, 1
      %s20 = ssub.s32 %s14, 2
      %s27 = sadd.s32 1, %s22
      %p28 = scmp.ge.s32.totalorder %s27, 1
      %s29 = scalar_select %p28, 0, %s27
      %s30 = sadd.s32 1, %s21
      %s31 = scalar_select %p28, %s30, %s21
      %p32 = scmp.ge.s32.totalorder %s31, 2
      %s33 = scalar_select %p32, 0, %s31
      %s34 = ssub.s32 %s21, %s33
      %p35 = scmp.eq.s32.totalorder %s34, 0
      %s37 = sadd.s32 %s36, 1
      %s38 = scalar_select %p35, %s36, %s37
      %p41 = pneg %p35
      %p42 = scmp.eq.s32.totalorder %s14, 1
      %p43 = por %p41, %p42
      %p44 = scmp.ne.s32.totalorder %s36, %s39
      %p45 = scmp.eq.s32.totalorder %s14, 0
      %p46 = por %p44, %p45
      %p47 = scmp.ne.s32.totalorder %s36, %s39
      %p48 = scmp.eq.s32.totalorder %s19, 1
      %p49 = por %p47, %p48
      %p50 = scmp.ne.s32.totalorder %s39, %s40
      %p51 = scmp.eq.s32.totalorder %s19, 0
      %p52 = por %p50, %p51
      %p53 = scmp.ne.s32.totalorder %s39, %s40
      %p54 = scmp.eq.s32.totalorder %s20, 1
      %p55 = por %p53, %p54
      %p57 = scmp.ne.s32.totalorder %s40, %s56
      %p58 = scmp.eq.s32.totalorder %s20, 0
      %p59 = por %p57, %p58
      %s60 = ssub.s32 %s22, %s29
      %p61 = scmp.eq.s32.totalorder %s60, 0
      %s63 = sadd.s32 %s62, 1
      %s64 = scalar_select %p61, %s62, %s63
      %p67 = pneg %p61
      %p68 = scmp.eq.s32.totalorder %s14, 1
      %p69 = por %p67, %p68
      %p70 = scmp.ne.s32.totalorder %s62, %s65
      %p71 = scmp.eq.s32.totalorder %s14, 0
      %p72 = por %p70, %p71
      %p73 = scmp.ne.s32.totalorder %s62, %s65
      %p74 = scmp.eq.s32.totalorder %s19, 1
      %p75 = por %p73, %p74
      %p76 = scmp.ne.s32.totalorder %s65, %s66
      %p77 = scmp.eq.s32.totalorder %s19, 0
      %p78 = por %p76, %p77
      %p79 = scmp.ne.s32.totalorder %s65, %s66
      %p80 = scmp.eq.s32.totalorder %s20, 1
      %p81 = por %p79, %p80
      %p83 = scmp.ne.s32.totalorder %s66, %s82
      %p84 = scmp.eq.s32.totalorder %s20, 0
      %p85 = por %p83, %p84
      %s86 = ssub.s32 %s22, %s29
      %p87 = scmp.eq.s32.totalorder %s86, 0
      %s89 = sadd.s32 %s88, 1
      %s90 = scalar_select %p87, %s88, %s89
      %p93 = pneg %p87
      %p94 = scmp.eq.s32.totalorder %s14, 1
      %p95 = por %p93, %p94
      %p96 = scmp.ne.s32.totalorder %s88, %s91
      %p97 = scmp.eq.s32.totalorder %s14, 0
      %p98 = por %p96, %p97
      %p99 = scmp.ne.s32.totalorder %s88, %s91
      %p100 = scmp.eq.s32.totalorder %s19, 1
      %p101 = por %p99, %p100
      %p102 = scmp.ne.s32.totalorder %s91, %s92
      %p103 = scmp.eq.s32.totalorder %s19, 0
      %p104 = por %p102, %p103
      %p105 = scmp.ne.s32.totalorder %s91, %s92
      %p106 = scmp.eq.s32.totalorder %s20, 1
      %p107 = por %p105, %p106
      %p109 = scmp.ne.s32.totalorder %s92, %s108
      %p110 = scmp.eq.s32.totalorder %s20, 0
      %p111 = por %p109, %p110
      %s112 = ssub.s32 %s22, %s29
      %p113 = scmp.eq.s32.totalorder %s112, 0
      %s115 = sadd.s32 %s114, 1
      %s116 = scalar_select %p113, %s114, %s115
      %p119 = pneg %p113
      %p120 = scmp.eq.s32.totalorder %s14, 1
      %p121 = por %p119, %p120
      %p122 = scmp.ne.s32.totalorder %s114, %s117
      %p123 = scmp.eq.s32.totalorder %s14, 0
      %p124 = por %p122, %p123
      %p125 = scmp.ne.s32.totalorder %s114, %s117
      %p126 = scmp.eq.s32.totalorder %s19, 1
      %p127 = por %p125, %p126
      %p128 = scmp.ne.s32.totalorder %s117, %s118
      %p129 = scmp.eq.s32.totalorder %s19, 0
      %p130 = por %p128, %p129
      %p131 = scmp.ne.s32.totalorder %s117, %s118
      %p132 = scmp.eq.s32.totalorder %s20, 1
      %p133 = por %p131, %p132
      %p135 = scmp.ne.s32.totalorder %s118, %s134
      %p136 = scmp.eq.s32.totalorder %s20, 0
      %p137 = por %p135, %p136
      %s139 = sadd.s32 %s138, 1
      %p142 = scmp.eq.s32.totalorder %s14, 1
      %p143 = scmp.ne.s32.totalorder %s138, %s140
      %p144 = scmp.eq.s32.totalorder %s14, 0
      %p145 = por %p143, %p144
      %p146 = scmp.ne.s32.totalorder %s138, %s140
      %p147 = scmp.eq.s32.totalorder %s19, 1
      %p148 = por %p146, %p147
      %p149 = scmp.ne.s32.totalorder %s140, %s141
      %p150 = scmp.eq.s32.totalorder %s19, 0
      %p151 = por %p149, %p150
      %p152 = scmp.ne.s32.totalorder %s140, %s141
      %p153 = scmp.eq.s32.totalorder %s20, 1
      %p154 = por %p152, %p153
      %p156 = scmp.ne.s32.totalorder %s141, %s155
      %p157 = scmp.eq.s32.totalorder %s20, 0
      %p158 = por %p156, %p157
      %s159 = ssub.s32 %s21, %s33
      %p160 = scmp.eq.s32.totalorder %s159, 0
      %s162 = sadd.s32 %s161, 1
      %s163 = scalar_select %p160, %s161, %s162
      %p166 = pneg %p160
      %p167 = scmp.eq.s32.totalorder %s14, 1
      %p168 = por %p166, %p167
      %p169 = scmp.ne.s32.totalorder %s161, %s164
      %p170 = scmp.eq.s32.totalorder %s14, 0
      %p171 = por %p169, %p170
      %p172 = scmp.ne.s32.totalorder %s161, %s164
      %p173 = scmp.eq.s32.totalorder %s19, 1
      %p174 = por %p172, %p173
      %p175 = scmp.ne.s32.totalorder %s164, %s165
      %p176 = scmp.eq.s32.totalorder %s19, 0
      %p177 = por %p175, %p176
      %p178 = scmp.ne.s32.totalorder %s164, %s165
      %p179 = scmp.eq.s32.totalorder %s20, 1
      %p180 = por %p178, %p179
      %p182 = scmp.ne.s32.totalorder %s165, %s181
      %p183 = scmp.eq.s32.totalorder %s20, 0
      %p184 = por %p182, %p183
      %p185 = scmp.le.s32.totalorder 1, %s14
      %p186 = scmp.lt.s32.totalorder %s14, 3
      %p187 = pnand %p185, %p186
      %p188 = pneg %p187
      // Predicated region
      $region9: #{_ff_geglu_impl.1} parent=5 // pred_check
        _
      $region10: #{_ff_geglu_impl.1} parent=5 // pred_check_branch
        %190 = sbr.rel (%p187) target = $region12
      $region11: #{_ff_geglu_impl.1} parent=5 // pred_region
        %s191 = ssub.s32 %s14, 1
        // Predicated region
        $region13: #{_ff_geglu_impl.1} parent=11 // pred_check
          %p192 = pneg %p78
        $region14: #{_ff_geglu_impl.1} parent=11 // pred_check_branch
          %194 = sbr.rel (%p192) target = $region16
        $region15: #{_ff_geglu_impl.1} parent=11 // pred_region
          %p195 = scmp.lt.s32.totalorder %s24, 0
          %s196 = scalar_select %p195, %s24, 0
          %s197 = smul.addr %s196, 8
          %s198 = scalar_lea.vmem %s1, %s197
        $region16: #{_ff_geglu_impl.1} parent=11 // pred_fallthru
          _
        // Predicated region
        $region17: #{_ff_geglu_impl.1} parent=11 // pred_check
          %p199 = pneg %p104
        $region18: #{_ff_geglu_impl.1} parent=11 // pred_check_branch
          %201 = sbr.rel (%p199) target = $region20
        $region19: #{_ff_geglu_impl.1} parent=11 // pred_region
          %p202 = scmp.lt.s32.totalorder %s24, 0
          %s203 = scalar_select %p202, %s24, 0
          %s204 = scalar_lea.vmem %s2, %s203
        $region20: #{_ff_geglu_impl.1} parent=11 // pred_fallthru
          _
        // Predicated region
        $region21: #{_ff_geglu_impl.1} parent=11 // pred_check
          %p205 = pneg %p130
        $region22: #{_ff_geglu_impl.1} parent=11 // pred_check_branch
          %207 = sbr.rel (%p205) target = $region24
        $region23: #{_ff_geglu_impl.1} parent=11 // pred_region
          %s208 = smul.u32 16, %s24
          %p209 = scmp.lt.s32.totalorder %s208, 15
          %s210 = scalar_select %p209, %s208, 15
          %s211 = smul.addr %s210, 8
          %s212 = scalar_lea.vmem %s3, %s211
          %s213 = smul.u32 16, %s24
        $region24: #{_ff_geglu_impl.1} parent=11 // pred_fallthru
          _
        // Predicated region
        $region25: #{_ff_geglu_impl.1} parent=11 // pred_check
          %p214 = pneg %p151
        $region26: #{_ff_geglu_impl.1} parent=11 // pred_check_branch
          %216 = sbr.rel (%p214) target = $region28
        $region27: #{_ff_geglu_impl.1} parent=11 // pred_region
          _
        $region28: #{_ff_geglu_impl.1} parent=11 // pred_fallthru
          _
      $region12: #{_ff_geglu_impl.1} parent=5 // pred_fallthru
        _
      %p217 = scmp.lt.s32.totalorder %s14, 2
      // Predicated region
      $region29: #{_ff_geglu_impl.1} parent=5 // pred_check
        %p218 = pneg %p217
      $region30: #{_ff_geglu_impl.1} parent=5 // pred_check_branch
        %220 = sbr.rel (%p218) target = $region32
      $region31: #{_ff_geglu_impl.1} parent=5 // pred_region
        // Predicated region
        $region33: #{_ff_geglu_impl.1} parent=31 // pred_check
          %p221 = pneg %p46
        $region34: #{_ff_geglu_impl.1} parent=31 // pred_check_branch
          %223 = sbr.rel (%p221) target = $region36
        $region35: #{_ff_geglu_impl.1} parent=31 // pred_region
          %p224 = scmp.lt.s32.totalorder %s21, 1
          %s225 = scalar_select %p224, %s21, 1
          %s226 = smul.addr %s225, 8
          %s227 = scalar_lea.vmem %s0, %s226
        $region36: #{_ff_geglu_impl.1} parent=31 // pred_fallthru
          _
      $region32: #{_ff_geglu_impl.1} parent=5 // pred_fallthru
        _
      %p228 = scmp.le.s32.totalorder 1, %s14
      %p229 = scmp.lt.s32.totalorder %s14, 3
      %p230 = pnand %p228, %p229
      %p231 = pneg %p230
      // Predicated region
      $region37: #{_ff_geglu_impl.1} parent=5 // pred_check
        _
      $region38: #{_ff_geglu_impl.1} parent=5 // pred_check_branch
        %233 = sbr.rel (%p230) target = $region40
      $region39: #{_ff_geglu_impl.1} parent=5 // pred_region
        %s234 = ssub.s32 %s14, 1
        %p235 = scmp.lt.s32.totalorder %s23, 1
        %s236 = scalar_select %p235, %s23, 1
        %s237 = smul.addr %s236, 8
        %s238 = scalar_lea.vmem %s0, %s237
        %p239 = pneg %p52
        %p240 = pneg %p49
        %p241 = scmp.lt.s32.totalorder %s24, 0
        %s242 = scalar_select %p241, %s24, 0
        %s243 = smul.addr %s242, 8
        %s244 = scalar_lea.vmem %s1, %s243
        %p245 = pneg %p78
        %p246 = pneg %p75
        %p247 = scmp.lt.s32.totalorder %s24, 0
        %s248 = scalar_select %p247, %s24, 0
        %s249 = scalar_lea.vmem %s2, %s248
        %p250 = pneg %p104
        %p251 = pneg %p101
        %s252 = smul.u32 16, %s24
        %p253 = scmp.lt.s32.totalorder %s252, 15
        %s254 = scalar_select %p253, %s252, 15
        %s255 = smul.addr %s254, 8
        %s256 = scalar_lea.vmem %s3, %s255
        %p257 = pneg %p130
        %p258 = pneg %p127
        %p259 = pneg %p151
        %p260 = pneg %p148
        %p261 = pneg %p177
        %p262 = pneg %p174
        %s263 = sand.u32 %s164, 1
        %s264 = scalar_lea.sflag [#allocation4], %s263
        %s265 = sand.u32 %s164, 1
        %s266 = smul.addr %s265, 8
        %s267 = scalar_lea.vmem [#allocation3], %s266
        %p268 = scmp.lt.s32.totalorder %s23, 1
        %s269 = scalar_select %p268, %s23, 1
        %s270 = smul.addr %s269, 8
        %s271 = scalar_lea.vmem %s0, %s270
        %p272 = scmp.lt.s32.totalorder %s24, 0
        %s273 = scalar_select %p272, %s24, 0
        %s274 = smul.addr %s273, 8
        %s275 = scalar_lea.vmem %s1, %s274
        %p276 = scmp.lt.s32.totalorder %s24, 0
        %s277 = scalar_select %p276, %s24, 0
        %s278 = scalar_lea.vmem %s2, %s277
        %s279 = smul.u32 16, %s24
        %p280 = scmp.lt.s32.totalorder %s279, 15
        %s281 = scalar_select %p280, %s279, 15
        %s282 = smul.addr %s281, 8
        %s283 = scalar_lea.vmem %s3, %s282
        %s284 = smul.u32 16, %s24
        %p285 = scmp.eq.s32.totalorder %s24, 0
        // Predicated region
        $region41: #{_ff_geglu_impl.1} parent=39 // pred_check
          %p286 = pneg %p285
        $region42: #{_ff_geglu_impl.1} parent=39 // pred_check_branch
          %288 = sbr.rel (%p286) target = $region44
        $region43: #{_ff_geglu_impl.1} parent=39 // pred_region
          %vm289 = vcmask 261120
          %290 = vst.msk [vmem:[#allocation2] sm:$0xff] %vm289, 0.0
        $region44: #{_ff_geglu_impl.1} parent=39 // pred_fallthru
          _
        %v291 = vld [vmem:[%s271] sm:$0xff]
        %v292 = vld [vmem:[%s275] sm:$0xff]
        %v293 = vld [vmem:[%s275 + $0x8] sm:$0xff]
        %v294 = vld [vmem:[%s275 + $0x10] sm:$0xff]
        %v295 = vld [vmem:[%s275 + $0x18] sm:$0xff]
        %v296 = vld [vmem:[%s278] sm:$0x1]
        %v298 = vperm.slane %v296, 0
        %vm300 = vcmask 261120
        %v302 = vsel %vm300, %v291, 0
        %304 = vmatpush.msra.mxu0 0.0
        %305 = vmatpush.msra.mxu0 0.0
        %306 = vmatpush.msra.mxu0 0.0
        %307 = vmatpush.msra.mxu0 0.0
        %308 = vmatpush.msra.mxu0 0.0
        %309 = vmatpush.msra.mxu0 0.0
        %310 = vmatpush.msra.mxu0 0.0
        %311 = vmatpush.msra.mxu0 0.0
        %312 = vmatpush.msra.mxu0 0.0
        %313 = vmatpush.msra.mxu0 0.0
        %314 = vmatpush.msra.mxu0 0.0
        %315 = vmatpush.msra.mxu0 0.0
        %316 = vmatpush.msra.mxu0 %v295
        %317 = vmatpush.msra.mxu0 %v294
        %318 = vmatpush.msra.mxu0 %v293
        %319 = vmatpush.msra.mxu0 %v292
        %320 = vmatmul.f32.gmra.mxu0 %v302
        %v321 = vpop.f32.mrf.mxu0
        %v322 = vadd.f32 %v298, %v321
        %323 = vdwg.mxu0
        %s324 = scalar_lea.vmem %s275, 32
        %v325 = vld [vmem:[%s324] sm:$0xff]
        %v326 = vld [vmem:[%s324 + $0x8] sm:$0xff]
        %v327 = vld [vmem:[%s324 + $0x10] sm:$0xff]
        %v328 = vld [vmem:[%s324 + $0x18] sm:$0xff]
        %s329 = scalar_lea.vmem %s278, 1
        %v330 = vld [vmem:[%s329] sm:$0x1]
        %v332 = vperm.slane %v330, 0
        %334 = vmatpush.msra.mxu0 0.0
        %335 = vmatpush.msra.mxu0 0.0
        %336 = vmatpush.msra.mxu0 0.0
        %337 = vmatpush.msra.mxu0 0.0
        %338 = vmatpush.msra.mxu0 0.0
        %339 = vmatpush.msra.mxu0 0.0
        %340 = vmatpush.msra.mxu0 0.0
        %341 = vmatpush.msra.mxu0 0.0
        %342 = vmatpush.msra.mxu0 0.0
        %343 = vmatpush.msra.mxu0 0.0
        %344 = vmatpush.msra.mxu0 0.0
        %345 = vmatpush.msra.mxu0 0.0
        %346 = vmatpush.msra.mxu0 %v328
        %347 = vmatpush.msra.mxu0 %v327
        %348 = vmatpush.msra.mxu0 %v326
        %349 = vmatpush.msra.mxu0 %v325
        %350 = vmatmul.f32.gmra.mxu0 %v302
        %v351 = vpop.f32.mrf.mxu0
        %v352 = vadd.f32 %v332, %v351
        %353 = vdwg.mxu0
        %v354 = vmul.f32 %v352, 0.5
        %v355 = vmul.f32 %v352, 0.70710677
        %v356 = vmul.f32 %v355, %v355
        %v357 = vmin.f32 16.0, %v356
        %v358 = vmul.f32 %v357, 2.1237322e-06
        %v359 = vadd.f32 %v358, 0.00028619796
        %v360 = vmul.f32 %v357, %v359
        %v361 = vadd.f32 %v360, 0.0036580483
        %v362 = vmul.f32 %v357, %v361
        %v363 = vadd.f32 %v362, 0.05243302
        %v364 = vmul.f32 %v357, %v363
        %v365 = vadd.f32 %v364, 0.18741608
        %v366 = vmul.f32 %v357, %v365
        %v367 = vadd.f32 %v366, 1.1283791
        %v368 = vmul.f32 %v355, %v367
        %v369 = vmul.f32 %v357, 3.8918573e-05
        %v370 = vadd.f32 %v369, 0.001143296
        %v371 = vmul.f32 %v357, %v370
        %v372 = vadd.f32 %v371, 0.014752088
        %v373 = vmul.f32 %v357, %v372
        %v374 = vadd.f32 %v373, 0.112945676
        %v375 = vmul.f32 %v357, %v374
        %v376 = vadd.f32 %v375, 0.4994258
        %v377 = vmul.f32 %v357, %v376
        %v378 = vadd.f32 %v377, 1.0
        %v379 = vrcp.pop %v378
        %v380 = vmul.f32 %v378, %v379
        %v381 = vsub.f32 1.0, %v380
        %v382 = vmul.f32 %v379, %v381
        %v383 = vadd.f32 %v379, %v382
        %vm384 = vweird.f32 %v378
        %vm385 = vweird.f32 %v379
        %vm386 = vmor %vm384, %vm385
        %v387 = vsel %vm386, %v379, %v383
        %v388 = vand.u32 2147483647, %v378
        %vm389 = vcmp.eq.f32.partialorder %v388, 8.507059e+37
        %v390 = vand.u32 %v378, 2147483648
        %v391 = vor.u32 1.1754944e-38, %v390
        %v392 = vsel %vm389, %v391, %v387
        %v393 = vmul.f32 %v368, %v392
        %v394 = vmin.f32 %v393, 1.0
        %v395 = vmax.f32 %v394, -1.0
        %v396 = vadd.f32 %v395, 1.0
        %v397 = vmul.f32 %v354, %v396
        %v398 = vmul.f32 %v322, %v397
        %v399 = vld [vmem:[#allocation2] sm:$0xff]
        %v400 = vld [vmem:[%s283] sm:$0xff]
        %v401 = vld [vmem:[%s283 + $0x8] sm:$0xff]
        %v402 = vld [vmem:[%s283 + $0x10] sm:$0xff]
        %v403 = vld [vmem:[%s283 + $0x18] sm:$0xff]
        %v404 = vld [vmem:[%s283 + $0x20] sm:$0xff]
        %v405 = vld [vmem:[%s283 + $0x28] sm:$0xff]
        %v406 = vld [vmem:[%s283 + $0x30] sm:$0xff]
        %v407 = vld [vmem:[%s283 + $0x38] sm:$0xff]
        %v408 = vld [vmem:[%s283 + $0x40] sm:$0xff]
        %v409 = vld [vmem:[%s283 + $0x48] sm:$0xff]
        %v410 = vld [vmem:[%s283 + $0x50] sm:$0xff]
        %v411 = vld [vmem:[%s283 + $0x58] sm:$0xff]
        %v412 = vld [vmem:[%s283 + $0x60] sm:$0xff]
        %v413 = vld [vmem:[%s283 + $0x68] sm:$0xff]
        %v414 = vld [vmem:[%s283 + $0x70] sm:$0xff]
        %v415 = vld [vmem:[%s283 + $0x78] sm:$0xff]
        %416 = vmatpush.msra.mxu0 %v415
        %417 = vmatpush.msra.mxu0 %v414
        %418 = vmatpush.msra.mxu0 %v413
        %419 = vmatpush.msra.mxu0 %v412
        %420 = vmatpush.msra.mxu0 %v411
        %421 = vmatpush.msra.mxu0 %v410
        %422 = vmatpush.msra.mxu0 %v409
        %423 = vmatpush.msra.mxu0 %v408
        %424 = vmatpush.msra.mxu0 %v407
        %425 = vmatpush.msra.mxu0 %v406
        %426 = vmatpush.msra.mxu0 %v405
        %427 = vmatpush.msra.mxu0 %v404
        %428 = vmatpush.msra.mxu0 %v403
        %429 = vmatpush.msra.mxu0 %v402
        %430 = vmatpush.msra.mxu0 %v401
        %431 = vmatpush.msra.mxu0 %v400
        %432 = vmatmul.f32.gmra.mxu0 %v398
        %v433 = vpop.f32.mrf.mxu0
        %v434 = vadd.f32 0.0, %v433
        %435 = vdwg.mxu0
        %v436 = vadd.f32 %v399, %v434
        %437 = vst.msk [vmem:[#allocation2] sm:$0xff] %vm300, %v436
        // Predicated region
        $region45: #{_ff_geglu_impl.1} parent=39 // pred_check
          %p438 = pneg %p285
        $region46: #{_ff_geglu_impl.1} parent=39 // pred_check_branch
          %440 = sbr.rel (%p438) target = $region48
        $region47: #{_ff_geglu_impl.1} parent=39 // pred_region
          %v441 = vld [vmem:[#allocation2] sm:$0xff]
          %v442 = vld [vmem:[%s4] sm:$0x1]
          %v444 = vperm.slane %v442, 0
          %v446 = vadd.f32 %v441, %v444
          %447 = vst.msk [vmem:[%s267] sm:$0xff] %vm300, %v446
        $region48: #{_ff_geglu_impl.1} parent=39 // pred_fallthru
          _
        %s448 = sand.u32 %s164, 1
        %s449 = scalar_lea.sflag [#allocation4], %s448
        %s450 = sand.u32 %s164, 1
        %s451 = smul.addr %s450, 8
        %s452 = scalar_lea.vmem [#allocation3], %s451
        // Predicated region
        $region49: #{_ff_geglu_impl.1} parent=39 // pred_check
          %p453 = pneg %p174
        $region50: #{_ff_geglu_impl.1} parent=39 // pred_check_branch
          %455 = sbr.rel (%p453) target = $region52
        $region51: #{_ff_geglu_impl.1} parent=39 // pred_region
          %457 = vsyncadd %s449, 0
          %s458 = smul.addr %s23, 8
          %s459 = scalar_lea.hbm %s5, %s458
          %s461 = sshll.u32 %s452, 4
          %s462 = int_to_ptr.vmem [resolvable:$true] %s461
          %s463 = sshll.u32 %s459, 4
          %s464 = int_to_ptr.hbm [resolvable:$true] %s463
          %466 = dma.vmem_to_hbm [thread:$0]  %s462, 128, %s464, %s449
        $region52: #{_ff_geglu_impl.1} parent=39 // pred_fallthru
          _
      $region40: #{_ff_geglu_impl.1} parent=5 // pred_fallthru
        _
      %p467 = scmp.le.s32.totalorder 2, %s14
      // Predicated region
      $region53: #{_ff_geglu_impl.1} parent=5 // pred_check
        %p468 = pneg %p467
      $region54: #{_ff_geglu_impl.1} parent=5 // pred_check_branch
        %470 = sbr.rel (%p468) target = $region56
      $region55: #{_ff_geglu_impl.1} parent=5 // pred_region
        %s471 = ssub.s32 %s14, 2
        // Predicated region
        $region57: #{_ff_geglu_impl.1} parent=55 // pred_check
          %p472 = pneg %p180
        $region58: #{_ff_geglu_impl.1} parent=55 // pred_check_branch
          %474 = sbr.rel (%p472) target = $region60
        $region59: #{_ff_geglu_impl.1} parent=55 // pred_region
          %s475 = sand.u32 %s165, 1
          %s476 = scalar_lea.sflag [#allocation4], %s475
          %s477 = sand.u32 %s165, 1
          %s478 = smul.addr %s477, 8
          %s479 = scalar_lea.vmem [#allocation3], %s478
          %481 = dma.done %s476, 128
        $region60: #{_ff_geglu_impl.1} parent=55 // pred_fallthru
          _
      $region56: #{_ff_geglu_impl.1} parent=5 // pred_fallthru
        _
    $region6: #{_ff_geglu_impl.1} parent=1 // loop_footer
      %s18 = sadd.s32 1, %s14
    $region7: #{_ff_geglu_impl.1} parent=1 // loop_footer_branch
      %13 = sbr.rel target = $region3
    $region8: #{_ff_geglu_impl.1} parent=1 // loop_exit
      _
    %482 = vsyncpa [#allocation4], 1
    %s483 = scalar_lea.sflag [#allocation4], 1
    %484 = vsyncpa %s483, 1

</llo_original>
